<compile_context>
chip_gen: v5e
topology: v5e:2x2
jax: 0.10.0
libtpu: 0.0.40
codegen_flags: <defaults>
</compile_context>

<pallas_src>
import jax
import jax.numpy as jnp
from jax import lax
from jax.experimental import pallas as pl
from jax.experimental.pallas import tpu as pltpu


# ----------------------------- helpers -------------------------------------

def _round_up(x, m):
    return (x + m - 1) // m * m


def _pad_to(x, shape):
    pads = [(0, s - d) for d, s in zip(x.shape, shape)]
    if any(p[1] for p in pads):
        return jnp.pad(x, pads)
    return x


def _vmem_budget_bytes():
    # Generation-aware VMEM cap: ~85% of physical VMEM if we can query it,
    # otherwise assume the smallest per-core VMEM across v5e/v6e/v7x (64 MiB).
    try:
        cap = int(pltpu.get_tpu_info().vmem_capacity_bytes)
    except Exception:
        cap = 64 * 1024 * 1024
    return max(int(cap * 0.85), 32 * 1024 * 1024)


# ----------------------------- Pallas kernels ------------------------------

def _linear_kernel(x_ref, w_ref, b_ref, o_ref):
    # x_ref: (tm, K) f32/bf16   w_ref: (K, tn) bf16   b_ref: (1, tn) f32   o_ref: (tm, tn)
    # Cast activations to bf16 here (near-free VPU work hidden under the MXU)
    # instead of paying an extra HBM round trip in the wrapper.
    x_bf = x_ref[...].astype(jnp.bfloat16)
    acc = jnp.dot(x_bf, w_ref[...], preferred_element_type=jnp.float32)
    o_ref[...] = (acc + b_ref[...]).astype(o_ref.dtype)


def _embed_onehot_kernel(ids_ref, tbl_ref, o_ref):
    # Small-vocab path (V <= 256): exact lookup via one-hot matmul on the MXU.
    # ids_ref: (tm, 1) i32   tbl_ref: (V, od_p) f32   o_ref: (tm, od_p)
    tm = ids_ref.shape[0]
    v = tbl_ref.shape[0]
    iota = lax.broadcasted_iota(jnp.int32, (tm, v), 1)
    onehot = (iota == ids_ref[...]).astype(tbl_ref.dtype)  # exact 0/1
    o_ref[...] = jnp.dot(onehot, tbl_ref[...],
                         preferred_element_type=jnp.float32).astype(o_ref.dtype)


def _make_gather_kernel(g):
    # Large-vocab path: G concurrent row DMAs from the HBM table per grid step.
    def kernel(ids_ref, tbl_hbm, o_ref, buf, sems):
        # ids_ref: SMEM (n_p,) i32   tbl_hbm: HBM (V, od_p)   o_ref: (g, od_p)
        # buf: VMEM (g, od_p)        sems: DMA sems (g,)
        base = pl.program_id(0) * g
        copies = []
        for slot in range(g):
            row = ids_ref[base + slot]
            cp = pltpu.make_async_copy(
                tbl_hbm.at[pl.ds(row, 1)], buf.at[pl.ds(slot, 1)], sems.at[slot])
            cp.start()
            copies.append(cp)
        for cp in copies:
            cp.wait()
        o_ref[...] = buf[...].astype(o_ref.dtype)
    return kernel


# ----------------------------- wrappers -------------------------------------

def linear_proj(x_flat, w_p, b_p, od, *, out_dtype=jnp.float32):
    """x_flat: [N, K] float, w_p: [K, od_p] bf16 (pre-padded), b_p: [1, od_p] f32.

    Returns [N, od] in out_dtype (f32 accumulation on the MXU).
    """
    n, k = x_flat.shape
    od_p = w_p.shape[1]
    x_item = jnp.dtype(x_flat.dtype).itemsize
    o_item = jnp.dtype(out_dtype).itemsize
    budget = _vmem_budget_bytes()

    # --- preferred: weight-stationary (W DMA'd once, 1-D grid over M) -------
    chosen_tm = None
    vmem_need = 0
    for tm_try in (512, 256, 128, 64, 32, 16, 8):
        tm_eff = min(tm_try, _round_up(n, 8))
        need = (2 * tm_eff * k * x_item        # x tiles (double-buffered)
                + 2 * k * od_p * 2             # W bf16 (conservatively x2)
                + 2 * od_p * 4                 # bias
                + 2 * tm_eff * od_p * o_item)  # output tiles
        if need <= budget:
            chosen_tm, vmem_need = tm_eff, need
            break

    if chosen_tm is not None:
        tm_eff = chosen_tm
        n_p = _round_up(n, tm_eff)
        x_p = _pad_to(x_flat, (n_p, k))
        grid = (n_p // tm_eff,)
        in_specs = [
            pl.BlockSpec((tm_eff, k), lambda i: (i, 0)),
            pl.BlockSpec((k, od_p), lambda i: (0, 0)),   # constant -> resident
            pl.BlockSpec((1, od_p), lambda i: (0, 0)),
        ]
        out_spec = pl.BlockSpec((tm_eff, od_p), lambda i: (i, 0))
        semantics = ("parallel",)
    else:
        # --- fallback: 2-D grid ordered (j, i) with i innermost so each W
        # column block is fetched once and reused across all M tiles. ---------
        # TODO(synk): for very large K also tile the contraction dim with a
        # pl.when-guarded f32 accumulator instead of holding full K per block.
        tn_eff = 128
        for tn_try in (2048, 1024, 512, 256, 128):
            need = (2 * 256 * k * x_item + 2 * k * tn_try * 2
                    + 2 * tn_try * 4 + 2 * 256 * tn_try * o_item)
            if need <= budget:
                tn_eff = tn_try
                break
        tm_eff = min(256, _round_up(n, 8))
        vmem_need = (2 * tm_eff * k * x_item + 2 * k * tn_eff * 2
                     + 2 * tn_eff * 4 + 2 * tm_eff * tn_eff * o_item)
        n_p = _round_up(n, tm_eff)
        od_p2 = _round_up(od_p, tn_eff)
        if od_p2 != od_p:
            w_p = _pad_to(w_p, (k, od_p2))
            b_p = _pad_to(b_p, (1, od_p2))
            od_p = od_p2
        x_p = _pad_to(x_flat, (n_p, k))
        grid = (od_p // tn_eff, n_p // tm_eff)
        in_specs = [
            pl.BlockSpec((tm_eff, k), lambda j, i: (i, 0)),
            pl.BlockSpec((k, tn_eff), lambda j, i: (0, j)),
            pl.BlockSpec((1, tn_eff), lambda j, i: (0, j)),
        ]
        out_spec = pl.BlockSpec((tm_eff, tn_eff), lambda j, i: (i, j))
        semantics = ("parallel", "parallel")

    cost = pl.CostEstimate(
        flops=int(2 * n_p * k * od_p),
        transcendentals=0,
        bytes_accessed=int(n_p * k * x_item + k * od_p * 2 + od_p * 4
                           + n_p * od_p * o_item),
    )
    vmem_limit = int(min(budget, max(vmem_need * 3 // 2, 16 * 1024 * 1024)))

    out = pl.pallas_call(
        _linear_kernel,
        out_shape=jax.ShapeDtypeStruct((n_p, od_p), out_dtype),
        grid_spec=pltpu.PrefetchScalarGridSpec(
            num_scalar_prefetch=0,
            grid=grid,
            in_specs=in_specs,
            out_specs=out_spec,
        ),
        compiler_params=pltpu.CompilerParams(
            dimension_semantics=semantics,
            vmem_limit_bytes=vmem_limit,
        ),
        cost_estimate=cost,
    )(x_p, w_p, b_p)
    return out[:n, :od]


def embed_lookup(ids_flat, table_p, od, *, out_dtype=jnp.float32,
                 onehot_vocab_max=256, gather_batch=8):
    """ids_flat: [N] int32, table_p: [V, od_p] f32 (pre-padded) -> [N, od] (exact lookup)."""
    n = ids_flat.shape[0]
    v, od_p = table_p.shape
    ids = jnp.clip(ids_flat.astype(jnp.int32), 0, v - 1)  # guard OOB rows before any DMA

    if v <= onehot_vocab_max:
        # Tiny vocab: one MXU matmul per 128-row tile, whole table resident.
        tm_eff = min(128, _round_up(n, 8))
        n_p = _round_up(n, tm_eff)
        ids_p = _pad_to(ids.reshape(n, 1), (n_p, 1))
        out = pl.pallas_call(
            _embed_onehot_kernel,
            out_shape=jax.ShapeDtypeStruct((n_p, od_p), out_dtype),
            grid_spec=pltpu.PrefetchScalarGridSpec(
                num_scalar_prefetch=0,
                grid=(n_p // tm_eff,),
                in_specs=[
                    pl.BlockSpec((tm_eff, 1), lambda i: (i, 0)),
                    pl.BlockSpec((v, od_p), lambda i: (0, 0)),
                ],
                out_specs=pl.BlockSpec((tm_eff, od_p), lambda i: (i, 0)),
            ),
            compiler_params=pltpu.CompilerParams(
                dimension_semantics=("parallel",)),
        )(ids_p, table_p)
        return out[:n, :od]

    # Large vocab: batched row gather. Table stays in HBM (pl.ANY); each grid
    # step issues `gather_batch` concurrent row DMAs and writes a lane-dense
    # (G, od_p) output block. Zero MXU work, per-step overhead amortized G-fold.
    g = gather_batch
    n_p = _round_up(n, g)
    ids_p = _pad_to(ids, (n_p,))  # padded ids are 0 -> valid row, sliced away below

    out = pl.pallas_call(
        _make_gather_kernel(g),
        out_shape=jax.ShapeDtypeStruct((n_p, od_p), out_dtype),
        grid_spec=pltpu.PrefetchScalarGridSpec(
            num_scalar_prefetch=1,                     # ids -> SMEM
            grid=(n_p // g,),
            in_specs=[pl.BlockSpec(memory_space=pl.ANY)],
            out_specs=pl.BlockSpec((g, od_p), lambda i, ids_ref: (i, 0)),
            scratch_shapes=[
                pltpu.VMEM((g, od_p), table_p.dtype),
                pltpu.SemaphoreType.DMA((g,)),
            ],
        ),
        compiler_params=pltpu.CompilerParams(
            dimension_semantics=("parallel",)),        # legal: disjoint output blocks
    )(ids_p, table_p)
    return out[:n, :od]


# ----------------------------- module port ----------------------------------

class BaseConditioner:
    """JAX/Pallas port of BaseConditioner.__init__ + output_proj application.

    The PyTorch base class leaves forward()/tokenize() abstract; subclasses embed
    the input and return (emb[B,T,output_dim], mask[B,T]). Here we expose the
    projection the module owns, with that ConditionType contract.
    """

    def __init__(self, dim: int, output_dim: int, input_token: bool = False,
                 padding_idx: int = 0, output_dtype=jnp.float32, key=None):
        self.dim = dim
        self.output_dim = output_dim
        self.input_token = input_token
        self.padding_idx = padding_idx
        self.output_dtype = output_dtype
        self.od_p = _round_up(output_dim, 128)
        if key is None:
            key = jax.random.PRNGKey(0)
        if input_token:
            # nn.Embedding(dim, output_dim, padding_idx): N(0,1) init, padding row zeroed.
            k0, _ = jax.random.split(key)
            table = jax.random.normal(k0, (dim, output_dim), jnp.float32)
            table = table.at[padding_idx].set(0.0)
            self.table = table                                   # reference copy
            self.table_p = _pad_to(table, (dim, self.od_p))      # pre-padded once
        else:
            # nn.Linear(dim, output_dim): U(-1/sqrt(dim), 1/sqrt(dim)) init.
            k0, k1 = jax.random.split(key)
            bound = 1.0 / (dim ** 0.5)
            w = jax.random.uniform(k0, (output_dim, dim), jnp.float32, -bound, bound)
            b = jax.random.uniform(k1, (output_dim,), jnp.float32, -bound, bound)
            self.w = w                                           # [OD, dim] f32 (PyTorch layout)
            self.b = b
            # Pre-transposed, pre-padded bf16 weight for the MXU; padded f32 bias.
            self.w_p = _pad_to(w.T.astype(jnp.bfloat16), (dim, self.od_p))
            self.b_p = _pad_to(b.astype(jnp.float32).reshape(1, output_dim),
                               (1, self.od_p))

    # TODO(synk): tokenize() is an abstract, host-side synchronization hook in the
    # PyTorch module; it has no device compute to translate.

    def __call__(self, inputs):
        if self.input_token:
            ids = inputs.astype(jnp.int32)                        # [B, T]
            B, T = ids.shape
            emb = embed_lookup(ids.reshape(B * T), self.table_p, self.output_dim,
                               out_dtype=self.output_dtype)
            emb = emb.reshape(B, T, self.output_dim)
            mask = (ids != self.padding_idx).astype(jnp.float32)
        else:
            x = inputs                                            # [B, T, dim]
            B, T, D = x.shape
            assert D == self.dim
            emb = linear_proj(x.reshape(B * T, D), self.w_p, self.b_p,
                              self.output_dim, out_dtype=self.output_dtype)
            emb = emb.reshape(B, T, self.output_dim)
            mask = jnp.ones((B, T), jnp.float32)
        return emb, mask


# ----------------------------- demo / check ---------------------------------

if __name__ == "__main__":
    key = jax.random.PRNGKey(0)
    B, T, dim, output_dim = 2, 8, 32, 64
    kx, kp, kt, kt2 = jax.random.split(key, 4)

    # 1) Dense (nn.Linear) path — in-kernel bf16 cast, f32 MXU accumulation.
    cond_lin = BaseConditioner(dim, output_dim, input_token=False, key=kp)
    x = jax.random.normal(kx, (B, T, dim), jnp.float32)
    emb_lin, mask_lin = cond_lin(x)
    jax.block_until_ready(emb_lin)

    # True f32 reference (loose tol for bf16 operand rounding)...
    ref_f32 = x.reshape(B * T, dim) @ cond_lin.w.T + cond_lin.b
    assert jnp.allclose(emb_lin.reshape(B * T, output_dim), ref_f32,
                        atol=2e-2, rtol=2e-2)
    # ...and the bf16-rounded-operand reference (tight tol — what the kernel computes).
    x_bf = x.reshape(B * T, dim).astype(jnp.bfloat16).astype(jnp.float32)
    w_bf = cond_lin.w.T.astype(jnp.bfloat16).astype(jnp.float32)
    ref_bf = jnp.dot(x_bf, w_bf, precision=lax.Precision.HIGHEST) + cond_lin.b
    assert jnp.allclose(emb_lin.reshape(B * T, output_dim), ref_bf,
                        atol=1e-3, rtol=1e-3)
    assert emb_lin.shape == (B, T, output_dim) and mask_lin.shape == (B, T)

    # 1b) Optional bf16 output (HBM writeback halved), same accumulation.
    cond_lin_bf = BaseConditioner(dim, output_dim, input_token=False,
                                  output_dtype=jnp.bfloat16, key=kp)
    emb_lin_bf, _ = cond_lin_bf(x)
    jax.block_until_ready(emb_lin_bf)
    assert emb_lin_bf.dtype == jnp.bfloat16 and emb_lin_bf.shape == (B, T, output_dim)

    # 2) Token (nn.Embedding) path, tiny vocab -> one-hot MXU kernel (exact).
    cond_tok = BaseConditioner(dim, output_dim, input_token=True, padding_idx=0, key=kp)
    ids = jax.random.randint(kt, (B, T), 0, dim, dtype=jnp.int32)
    emb_tok, mask_tok = cond_tok(ids)
    jax.block_until_ready(emb_tok)
    ref_tok = cond_tok.table[ids.reshape(-1)]
    assert jnp.allclose(emb_tok.reshape(B * T, output_dim), ref_tok, atol=1e-5)
    assert emb_tok.shape == (B, T, output_dim) and mask_tok.shape == (B, T)

    # 3) Token path, large vocab -> batched HBM row-gather kernel (exact).
    big_vocab = 2048
    cond_big = BaseConditioner(big_vocab, output_dim, input_token=True,
                               padding_idx=0, key=kp)
    ids_big = jax.random.randint(kt2, (B, T), 0, big_vocab, dtype=jnp.int32)
    emb_big, mask_big = cond_big(ids_big)
    jax.block_until_ready(emb_big)
    ref_big = cond_big.table[ids_big.reshape(-1)]
    assert jnp.allclose(emb_big.reshape(B * T, output_dim), ref_big, atol=1e-5)
    assert emb_big.shape == (B, T, output_dim) and mask_big.shape == (B, T)

    print("KERNEL_OK")
</pallas_src>

<mosaic_0001>
module attributes {stable_mosaic.version = 11 : i64} {
  func.func @_linear_kernel(%arg0: i32, %arg1: memref<16x32xf32, #tpu.memory_space<vmem>>, %arg2: memref<32x128xbf16, #tpu.memory_space<vmem>>, %arg3: memref<1x128xf32, #tpu.memory_space<vmem>>, %arg4: memref<16x128xf32, #tpu.memory_space<vmem>>) attributes {dimension_semantics = [#tpu.dimension_semantics<parallel>], iteration_bounds = array<i64: 1>, scalar_prefetch = 0 : i64, scratch_operands = 0 : i64, tpu.core_type = #tpu.core_type<tc>, window_params = [{transform_indices = @transform_0, window_bounds = array<i64: 16, 32>}, {pipeline_mode = #tpu.pipeline_mode<synchronous>, transform_indices = @transform_1, window_bounds = array<i64: 32, 128>}, {pipeline_mode = #tpu.pipeline_mode<synchronous>, transform_indices = @transform_2, window_bounds = array<i64: 1, 128>}, {transform_indices = @transform_3, window_bounds = array<i64: 16, 128>}]} {
    %c0 = arith.constant 0 : index
    %c0_0 = arith.constant 0 : index
    %0 = vector.load %arg1[%c0, %c0_0] : memref<16x32xf32, #tpu.memory_space<vmem>>, vector<16x32xf32>
    %1 = arith.truncf %0 : vector<16x32xf32> to vector<16x32xbf16>
    %c0_1 = arith.constant 0 : index
    %c0_2 = arith.constant 0 : index
    %2 = vector.load %arg2[%c0_1, %c0_2] : memref<32x128xbf16, #tpu.memory_space<vmem>>, vector<32x128xbf16>
    %cst = arith.constant dense<0.000000e+00> : vector<16x128xf32>
    %3 = tpu.matmul %1, %2, %cst {dimension_numbers = #tpu.dot_dimension_numbers<[1], [0], [0], [1], [0, 0, 1, 1], [], []>} : vector<16x32xbf16>, vector<32x128xbf16>, vector<16x128xf32> -> vector<16x128xf32>
    %c0_3 = arith.constant 0 : index
    %c0_4 = arith.constant 0 : index
    %4 = vector.load %arg3[%c0_3, %c0_4] : memref<1x128xf32, #tpu.memory_space<vmem>>, vector<1x128xf32>
    %5 = vector.broadcast %4 : vector<1x128xf32> to vector<16x128xf32>
    %6 = arith.addf %3, %5 : vector<16x128xf32>
    %c0_5 = arith.constant 0 : index
    %c0_6 = arith.constant 0 : index
    %7 = vector.load %arg4[%c0_5, %c0_6] : memref<16x128xf32, #tpu.memory_space<vmem>>, vector<16x128xf32>
    tpu.vector_store %arg4[%c0_5, %c0_6], %6 {strides = array<i32>} : memref<16x128xf32, #tpu.memory_space<vmem>>, vector<16x128xf32>,
    return
  }
  func.func @transform_0(%arg0: i32) -> (i32, i32) {
    %c0_i32 = arith.constant 0 : i32
    %c0_i32_0 = arith.constant 0 : i32
    return %arg0, %c0_i32 : i32, i32
  }
  func.func @transform_1(%arg0: i32) -> (i32, i32) {
    %c0_i32 = arith.constant 0 : i32
    %c0_i32_0 = arith.constant 0 : i32
    %c0_i32_1 = arith.constant 0 : i32
    return %c0_i32, %c0_i32_0 : i32, i32
  }
  func.func @transform_2(%arg0: i32) -> (i32, i32) {
    %c0_i32 = arith.constant 0 : i32
    %c0_i32_0 = arith.constant 0 : i32
    %c0_i32_1 = arith.constant 0 : i32
    return %c0_i32, %c0_i32_0 : i32, i32
  }
  func.func @transform_3(%arg0: i32) -> (i32, i32) {
    %c0_i32 = arith.constant 0 : i32
    %c0_i32_0 = arith.constant 0 : i32
    return %arg0, %c0_i32 : i32, i32
  }
}

</mosaic_0001>

<llo_original>
// kernel: tpu_custom_call.1
$region0: #{tpu_custom_call.1}
  #allocation0 [shape = 'u32[]', space=smem, size = 0x4, offset = 0x4, fixed_abs, tag = 'smem constant byte address 0x4 - core index']
  #allocation1 [shape = 'u32[72,128]{1,0:T(1,128)}', space=vmem, size = 0x9000, scoped, tag = 'internal scratch']
  %s0 = inlined_call_operand.hbm [shape: f32[16,32], index: 0, kind: input, shape index: {}]
  %s1 = inlined_call_operand.hbm [shape: bf16[32,128], index: 1, kind: input, shape index: {}]
  %s2 = inlined_call_operand.vmem [shape: f32[1,128], index: 2, kind: input, shape index: {}]
  %s3 = inlined_call_operand.hbm [shape: f32[16,128], index: 3, kind: output, shape index: {}]
  %s4 = sld [smem:[#allocation0]]
  $region30: #{tpu_custom_call.1} parent=0
    _
  %s6 = ssub.s32 1, %s4
  %s7 = scalar_select 0, %s6, %s4
  $region1: #{tpu_custom_call.1} parent=0
    #allocation2 [shape = 'u8[8192]{0}', space=vmem, size = 0x2000, scoped, tag = 'input window, operand 0, single buffered']
    #allocation3 [shape = 's32[1]{0}', space=sflag, size = 0x4, scoped, tag = 'scoped memory for tpu_custom_call.1']
    #allocation4 [shape = 's32[1]{0}', space=sflag, size = 0x4, scoped, tag = 'scoped memory for tpu_custom_call.1']
    #allocation5 [shape = 'u8[8192]{0}', space=vmem, size = 0x2000, scoped, tag = 'input window, operand 1, single buffered']
    #allocation6 [shape = 's32[1]{0}', space=sflag, size = 0x4, scoped, tag = 'scoped memory for tpu_custom_call.1']
    #allocation7 [shape = 'u8[8192]{0}', space=vmem, size = 0x2000, scoped, tag = 'output window, operand 0, single buffered']
    %8 = vsyncpa [#allocation3], 0
    %9 = vsyncpa [#allocation6], 0
    %10 = vsyncpa [#allocation4], 0
    // Predicated region
    $region2: #{tpu_custom_call.1} parent=1 // pred_check
      _
    $region3: #{tpu_custom_call.1} parent=1 // pred_check_branch
      %12 = sbr.rel (0) target = $region5
    $region4: #{tpu_custom_call.1} parent=1 // pred_region
      %14 = vsyncadd [#allocation3], 0
      %s15 = sshll.u32 %s0, 4
      %s16 = int_to_ptr.hbm [resolvable:$true] %s15
      %s17 = sshll.u32 [#allocation2], 4
      %s18 = int_to_ptr.vmem [resolvable:$true] %s17
      %23 = dma.hbm_to_vmem [thread:$0]  %s16, 256, %s18, [#allocation3], 128, 128, 8
    $region5: #{tpu_custom_call.1} parent=1 // pred_fallthru
      _
    // Predicated region
    $region6: #{tpu_custom_call.1} parent=1 // pred_check
      _
    $region7: #{tpu_custom_call.1} parent=1 // pred_check_branch
      %25 = sbr.rel (0) target = $region9
    $region8: #{tpu_custom_call.1} parent=1 // pred_region
      %27 = vsyncadd [#allocation6], 0
      %s28 = sshll.u32 %s1, 4
      %s29 = int_to_ptr.hbm [resolvable:$true] %s28
      %s30 = sshll.u32 [#allocation5], 4
      %s31 = int_to_ptr.vmem [resolvable:$true] %s30
      %36 = dma.hbm_to_vmem [thread:$0]  %s29, 256, %s31, [#allocation6], 64, 64, 4
    $region9: #{tpu_custom_call.1} parent=1 // pred_fallthru
      _
    // Predicated region
    $region10: #{tpu_custom_call.1} parent=1 // pred_check
      _
    $region11: #{tpu_custom_call.1} parent=1 // pred_check_branch
      %38 = sbr.rel (0) target = $region13
    $region12: #{tpu_custom_call.1} parent=1 // pred_region
      _
    $region13: #{tpu_custom_call.1} parent=1 // pred_fallthru
      _
    // Predicated region
    $region14: #{tpu_custom_call.1} parent=1 // pred_check
      _
    $region15: #{tpu_custom_call.1} parent=1 // pred_check_branch
      %40 = sbr.rel (0) target = $region17
    $region16: #{tpu_custom_call.1} parent=1 // pred_region
      %42 = dma.done [#allocation3], 256
    $region17: #{tpu_custom_call.1} parent=1 // pred_fallthru
      _
    // Predicated region
    $region18: #{tpu_custom_call.1} parent=1 // pred_check
      _
    $region19: #{tpu_custom_call.1} parent=1 // pred_check_branch
      %44 = sbr.rel (0) target = $region21
    $region20: #{tpu_custom_call.1} parent=1 // pred_region
      %46 = dma.done [#allocation6], 256
    $region21: #{tpu_custom_call.1} parent=1 // pred_fallthru
      _
    %v48 = vld [vmem:[#allocation2] sm:$0xff]
    %v49 = vld [vmem:[#allocation2 + $0x8] sm:$0xff]
    %v50 = vpack.c.bf16 %v49, %v48
    %v51 = vld [vmem:[#allocation5] sm:$0xf]
    %v52 = vld [vmem:[#allocation5 + $0x4] sm:$0xf]
    %v53 = vld [vmem:[#allocation5 + $0x8] sm:$0xf]
    %v54 = vld [vmem:[#allocation5 + $0xc] sm:$0xf]
    %v55 = vld [vmem:[%s2] sm:$0x1]
    %v57 = vperm.slane %v55, 0
    %v63 = vunpack.c.l.b16 %v51
    %v64 = vunpack.c.l.b16 %v52
    %v65 = vunpack.c.l.b16 %v53
    %v66 = vunpack.c.l.b16 %v54
    %v67 = vpack.c.b16 %v64, %v63
    %v68 = vpack.c.b16 %v66, %v65
    %vm71 = vcmask 261120
    %v73 = vsel %vm71, %v50, 0
    %75 = vmatpush.bf16.msra.mxu0 0
    %76 = vmatpush.bf16.msra.mxu0 0
    %77 = vmatpush.bf16.msra.mxu0 0
    %78 = vmatpush.bf16.msra.mxu0 0
    %79 = vmatpush.bf16.msra.mxu0 0
    %80 = vmatpush.bf16.msra.mxu0 0
    %81 = vmatpush.bf16.msra.mxu0 %v68
    %82 = vmatpush.bf16.msra.mxu0 %v67
    %83 = vmatmul.bf16.gmra.mxu0 %v73
    %v84 = vpop.f32.mrf.mxu0
    %v85 = vadd.f32 %v57, %v84
    %v86 = vpop.f32.mrf.mxu0
    %v87 = vadd.f32 %v57, %v86
    %88 = vdwg.mxu0
    %89 = vst [vmem:[#allocation7] sm:$0xff] %v85
    %90 = vst [vmem:[#allocation7 + $0x8] sm:$0xff] %v87
    // Predicated region
    $region22: #{tpu_custom_call.1} parent=1 // pred_check
      _
    $region23: #{tpu_custom_call.1} parent=1 // pred_check_branch
      %92 = sbr.rel (0) target = $region25
    $region24: #{tpu_custom_call.1} parent=1 // pred_region
      %94 = vsyncadd [#allocation4], 0
      %s95 = sshll.u32 [#allocation7], 4
      %s96 = int_to_ptr.vmem [resolvable:$true] %s95
      %s97 = sshll.u32 %s3, 4
      %s98 = int_to_ptr.hbm [resolvable:$true] %s97
      %103 = dma.vmem_to_hbm [thread:$0]  %s96, 256, %s98, [#allocation4], 128, 128, 8
    $region25: #{tpu_custom_call.1} parent=1 // pred_fallthru
      _
    // Predicated region
    $region26: #{tpu_custom_call.1} parent=1 // pred_check
      _
    $region27: #{tpu_custom_call.1} parent=1 // pred_check_branch
      %105 = sbr.rel (0) target = $region29
    $region28: #{tpu_custom_call.1} parent=1 // pred_region
      %107 = dma.done [#allocation4], 256
    $region29: #{tpu_custom_call.1} parent=1 // pred_fallthru
      _
    %108 = vsyncpa [#allocation3], 1
    %109 = vsyncpa [#allocation6], 1
    %110 = vsyncpa [#allocation4], 1

</llo_original>
